<compile_context>
chip_gen: v5e
topology: v5e:2x2
jax: 0.10.0
libtpu: 0.0.40
codegen_flags: <defaults>
</compile_context>

<pallas_src>
import jax
import jax.numpy as jnp
from jax.experimental import pallas as pl
from jax.experimental.pallas import tpu as pltpu

MAX_SHIFT = 8
PAD = MAX_SHIFT // 2          # 4
_FAST_PATH_BYTES = 2 << 20    # below this, a fused XLA reduction beats any pipeline


def _round_up(n, m):
    return ((n + m - 1) // m) * m


def _largest_divisor_leq(n, cap):
    """Largest divisor of n that is <= cap (at least 1)."""
    cap = max(1, min(cap, n))
    best, d = 1, 1
    while d * d <= n:
        if n % d == 0:
            if d <= cap and d > best:
                best = d
            q = n // d
            if q <= cap and q > best:
                best = q
        d += 1
    return best


def _budgets():
    """(per-input block budget, scoped-VMEM limit) derived from the chip."""
    cap = 64 << 20                          # conservative default = v7x-class VMEM
    try:
        cap = int(getattr(pltpu.get_tpu_info(), "vmem_capacity_bytes", cap))
    except Exception:
        pass
    if cap >= (100 << 20):                  # v5e / v6e class (128 MiB physical VMEM)
        return 8 << 20, 64 << 20
    vmem_limit = min(44 << 20, int(cap * 0.7))   # v7x class: leave headroom of 64 MiB
    block_budget = max(1 << 20, min(5 << 20, vmem_limit // 6))
    return block_budget, vmem_limit


def _plan_rows(nc, row_bytes, block_budget):
    """Rows-per-block B and (possibly zero-padded) total rows.

    Prefers a divisor of nc (zero-copy reshape); zero-pads rows to a multiple of 8
    only when nc factors so badly that blocks would be tiny."""
    b_cap = max(1, min(block_budget // max(1, row_bytes), 4096))  # 4096 caps fold unroll
    b = _largest_divisor_leq(nc, b_cap)
    if nc > b_cap and 4 * b * row_bytes < block_budget:
        b = max(8, (b_cap // 8) * 8)
        return b, _round_up(nc, b)
    return b, nc


def _replication_weights(shift, size):
    """#shifted-window positions that clamp (replication pad) onto each original index."""
    pos = jnp.clip(jnp.arange(size, dtype=jnp.int32) + shift - PAD, 0, size - 1)
    return jnp.sum(
        pos[None, :] == jnp.arange(size, dtype=jnp.int32)[:, None], axis=1
    ).astype(jnp.float32)


def shift_wrapper_mse(x, target, shift_xy, *, force_kernel=False, block_budget=None):
    """ShiftWrapper(MSELoss).forward: ReplicationPad2d(4), shift by (sx, sy) in
    [0, 8), crop back to HxW, mean squared error.  x, target: (N, C, H, W)."""
    assert x.shape == target.shape
    N, C, H, W = x.shape
    NC, HW = N * C, H * W
    denom = float(NC * HW)

    shift_xy = jnp.asarray(shift_xy).astype(jnp.int32)
    wr = _replication_weights(shift_xy[0], H)              # (H,)
    wc = _replication_weights(shift_xy[1], W)              # (W,)
    w = (wr[:, None] * wc[None, :]).reshape(1, 1, HW)      # tiny resident weight map

    x_flat = x.reshape(NC, HW)
    t_flat = target.reshape(NC, HW)

    # Tiny inputs: grid/pipeline fixed costs dwarf the work -> fused XLA reduction.
    if not force_kernel and NC * HW * x.dtype.itemsize <= _FAST_PATH_BYTES:
        d = x_flat.astype(jnp.float32) - t_flat.astype(jnp.float32)
        return jnp.sum(d * d * w.reshape(1, HW)) / denom

    default_budget, vmem_limit = _budgets()
    if block_budget is None:
        block_budget = default_budget

    row_bytes = _round_up(HW, 128) * x.dtype.itemsize       # lane-padded VMEM row
    B, NC_pad = _plan_rows(NC, row_bytes, block_budget)
    if NC_pad != NC:                                         # zero rows contribute 0
        x_flat = jnp.pad(x_flat, ((0, NC_pad - NC), (0, 0)))
        t_flat = jnp.pad(t_flat, ((0, NC_pad - NC), (0, 0)))

    G = NC_pad // B                 # real row-blocks
    num_cores = 2                   # always expose a 2-way "parallel" axis (v7x megacore)
    Gc = -(-G // num_cores)         # blocks per core (ceil)
    has_overflow = num_cores * Gc != G
    SUB = 8 if B % 8 == 0 else 1    # accumulator rows (sublane-aligned fold)

    xb = x_flat.reshape(G, B, HW)   # contiguous, metadata-only reshape
    tb = t_flat.reshape(G, B, HW)

    def kernel(w_ref, x_ref, t_ref, o_ref, acc_ref):
        p = pl.program_id(0)
        i = pl.program_id(1)

        @pl.when(i == 0)
        def _init():
            acc_ref[...] = jnp.zeros_like(acc_ref)

        def _accumulate():
            # Pure VPU work per step: subtract, square, fold rows into SUB rows.
            d = x_ref[0].astype(jnp.float32) - t_ref[0].astype(jnp.float32)
            d2 = d * d
            if B == SUB:
                part = d2
            elif SUB == 8:
                part = jnp.sum(d2.reshape(B // 8, 8, HW), axis=0)
            else:
                part = jnp.sum(d2, axis=0, keepdims=True)
            acc_ref[...] += part

        if has_overflow:
            # Last grid step of core 1 maps to a duplicate (clamped) block: skip it.
            pl.when(p * Gc + i < G)(_accumulate)
        else:
            _accumulate()

        @pl.when(i == Gc - 1)
        def _finalize():
            # Position-only replication weights applied once per core, not per step.
            o_ref[...] = jnp.sum(acc_ref[...] * w_ref[0]).reshape(1, 1, 1)

    if has_overflow:
        blk = lambda p, i: (jnp.minimum(p * Gc + i, G - 1), 0, 0)
    else:
        blk = lambda p, i: (p * Gc + i, 0, 0)

    # Deeper buffering only helps when blocks are small but the per-core pipeline is long.
    if B * row_bytes < (4 << 20) and Gc >= 4:
        make_data_spec = lambda: pl.BlockSpec((1, B, HW), blk,
                                              pipeline_mode=pl.Buffered(3))
    else:
        make_data_spec = lambda: pl.BlockSpec((1, B, HW), blk)

    grid_spec = pltpu.PrefetchScalarGridSpec(
        num_scalar_prefetch=0,
        grid=(num_cores, Gc),
        in_specs=[
            pl.BlockSpec((1, 1, HW), lambda p, i: (0, 0, 0)),   # resident weight map
            make_data_spec(),                                   # x
            make_data_spec(),                                   # target
        ],
        out_specs=pl.BlockSpec((1, 1, 1), lambda p, i: (p, 0, 0)),  # per-core partial
        scratch_shapes=[pltpu.VMEM((SUB, HW), jnp.float32)],
    )

    cost = pl.CostEstimate(
        flops=3 * NC_pad * HW,
        transcendentals=0,
        bytes_accessed=2 * NC_pad * HW * x.dtype.itemsize + HW * 4,
    )

    partials = pl.pallas_call(
        kernel,
        out_shape=jax.ShapeDtypeStruct((num_cores, 1, 1), jnp.float32),
        grid_spec=grid_spec,
        compiler_params=pltpu.CompilerParams(
            dimension_semantics=("parallel", "arbitrary"),
            vmem_limit_bytes=vmem_limit,
        ),
        cost_estimate=cost,
    )(w, xb, tb)

    # Mean over the N*C*H*W cropped elements (padded zero rows contribute nothing).
    return jnp.sum(partials) / denom


def _reference(x, t, sx, sy):
    """Pure-JAX reference: edge-pad, shifted slice, MSE — mirrors the PyTorch module."""
    x = x.astype(jnp.float32)
    t = t.astype(jnp.float32)
    xp = jnp.pad(x, ((0, 0), (0, 0), (PAD, PAD), (PAD, PAD)), mode="edge")
    tp = jnp.pad(t, ((0, 0), (0, 0), (PAD, PAD), (PAD, PAD)), mode="edge")
    H, W = x.shape[2], x.shape[3]
    xs = xp[:, :, sx:sx + H, sy:sy + W]
    ts = tp[:, :, sx:sx + H, sy:sy + W]
    return jnp.mean((xs - ts) ** 2)


if __name__ == "__main__":
    key = jax.random.PRNGKey(0)

    # Small shapes, chosen to cover every kernel code path:
    #  single-block, 8-aligned fold, multi-step grid, odd block count (skipped
    #  overflow step on core 1), zero-pad fallback, bf16 inputs, and the XLA fast path.
    cases = [
        ((2, 4, 16, 16), jnp.float32, (3, 5), dict(force_kernel=True)),
        ((4, 8, 16, 16), jnp.float32, (0, 7), dict(force_kernel=True)),
        ((4, 8, 16, 16), jnp.float32, (7, 0), dict(force_kernel=True, block_budget=8 * 1024)),
        ((3, 5, 24, 24), jnp.float32, (2, 6), dict(force_kernel=True, block_budget=8 * 1024)),
        ((1, 13, 16, 16), jnp.float32, (4, 1), dict(force_kernel=True, block_budget=8 * 1024)),
        ((2, 3, 16, 24), jnp.bfloat16, (5, 3), dict(force_kernel=True)),
        ((2, 4, 16, 16), jnp.float32, (3, 5), dict()),   # tiny-input XLA fast path
    ]

    for idx, (shape, dtype, (sx, sy), kw) in enumerate(cases):
        key, kx, kt = jax.random.split(key, 3)
        x = jax.random.normal(kx, shape, dtype=jnp.float32).astype(dtype)
        t = jax.random.normal(kt, shape, dtype=jnp.float32).astype(dtype)
        shift_xy = jnp.array([sx, sy], dtype=jnp.int32)

        out = jax.block_until_ready(shift_wrapper_mse(x, t, shift_xy, **kw))
        ref = jax.block_until_ready(_reference(x, t, sx, sy))
        assert jnp.allclose(out, ref, rtol=1e-4, atol=1e-6), (idx, float(out), float(ref))

    print("KERNEL_OK")
</pallas_src>

<mosaic_0001>
module attributes {stable_mosaic.version = 11 : i64} {
  func.func @kernel(%arg0: i32, %arg1: i32, %arg2: memref<1x1x256xf32, #tpu.memory_space<vmem>>, %arg3: memref<1x8x256xf32, #tpu.memory_space<vmem>>, %arg4: memref<1x8x256xf32, #tpu.memory_space<vmem>>, %arg5: memref<1x1x1xf32, #tpu.memory_space<vmem>>, %arg6: memref<8x256xf32, #tpu.memory_space<vmem>>) attributes {dimension_semantics = [#tpu.dimension_semantics<parallel>, #tpu.dimension_semantics<arbitrary>], iteration_bounds = array<i64: 2, 1>, scalar_prefetch = 0 : i64, scratch_operands = 1 : i64, tpu.core_type = #tpu.core_type<tc>, window_params = [{pipeline_mode = #tpu.pipeline_mode<synchronous>, transform_indices = @transform_0, window_bounds = array<i64: 1, 1, 256>}, {transform_indices = @transform_1, window_bounds = array<i64: 1, 8, 256>}, {transform_indices = @transform_2, window_bounds = array<i64: 1, 8, 256>}, {transform_indices = @transform_3, window_bounds = array<i64: 1, 1, 1>}]} {
    %c0_i32 = arith.constant 0 : i32
    %0 = arith.cmpi eq, %arg1, %c0_i32 : i32
    %1 = arith.extui %0 : i1 to i32
    %c0_i32_0 = arith.constant 0 : i32
    %2 = arith.cmpi ne, %1, %c0_i32_0 : i32
    scf.if %2 {
      %cst = arith.constant 0.000000e+00 : f32
      %11 = vector.broadcast %cst : f32 to vector<8x256xf32>
      %c0 = arith.constant 0 : index
      %c0_5 = arith.constant 0 : index
      %12 = vector.load %arg6[%c0, %c0_5] : memref<8x256xf32, #tpu.memory_space<vmem>>, vector<8x256xf32>
      tpu.vector_store %arg6[%c0, %c0_5], %11 {strides = array<i32>} : memref<8x256xf32, #tpu.memory_space<vmem>>, vector<8x256xf32>,
    } else {
    }
    %c1_i32 = arith.constant 1 : i32
    %3 = arith.muli %arg0, %c1_i32 : i32
    %4 = arith.addi %3, %arg1 : i32
    %c1_i32_1 = arith.constant 1 : i32
    %5 = arith.cmpi slt, %4, %c1_i32_1 : i32
    %6 = arith.extui %5 : i1 to i32
    %c0_i32_2 = arith.constant 0 : i32
    %7 = arith.cmpi ne, %6, %c0_i32_2 : i32
    scf.if %7 {
      %c0 = arith.constant 0 : index
      %c0_5 = arith.constant 0 : index
      %c0_6 = arith.constant 0 : index
      %11 = vector.load %arg3[%c0, %c0_5, %c0_6] : memref<1x8x256xf32, #tpu.memory_space<vmem>>, vector<1x8x256xf32>
      %12 = vector.shape_cast %11 : vector<1x8x256xf32> to vector<8x256xf32>
      %c0_7 = arith.constant 0 : index
      %c0_8 = arith.constant 0 : index
      %c0_9 = arith.constant 0 : index
      %13 = vector.load %arg4[%c0_7, %c0_8, %c0_9] : memref<1x8x256xf32, #tpu.memory_space<vmem>>, vector<1x8x256xf32>
      %14 = vector.shape_cast %13 : vector<1x8x256xf32> to vector<8x256xf32>
      %15 = arith.subf %12, %14 : vector<8x256xf32>
      %16 = arith.mulf %15, %15 : vector<8x256xf32>
      %c0_10 = arith.constant 0 : index
      %c0_11 = arith.constant 0 : index
      %17 = vector.load %arg6[%c0_10, %c0_11] : memref<8x256xf32, #tpu.memory_space<vmem>>, vector<8x256xf32>
      %18 = arith.addf %17, %16 : vector<8x256xf32>
      %c0_12 = arith.constant 0 : index
      %c0_13 = arith.constant 0 : index
      %19 = vector.load %arg6[%c0_12, %c0_13] : memref<8x256xf32, #tpu.memory_space<vmem>>, vector<8x256xf32>
      tpu.vector_store %arg6[%c0_12, %c0_13], %18 {strides = array<i32>} : memref<8x256xf32, #tpu.memory_space<vmem>>, vector<8x256xf32>,
    } else {
    }
    %c0_i32_3 = arith.constant 0 : i32
    %8 = arith.cmpi eq, %arg1, %c0_i32_3 : i32
    %9 = arith.extui %8 : i1 to i32
    %c0_i32_4 = arith.constant 0 : i32
    %10 = arith.cmpi ne, %9, %c0_i32_4 : i32
    scf.if %10 {
      %c0 = arith.constant 0 : index
      %c0_5 = arith.constant 0 : index
      %11 = vector.load %arg6[%c0, %c0_5] : memref<8x256xf32, #tpu.memory_space<vmem>>, vector<8x256xf32>
      %c0_6 = arith.constant 0 : index
      %c0_7 = arith.constant 0 : index
      %c0_8 = arith.constant 0 : index
      %12 = vector.load %arg2[%c0_6, %c0_7, %c0_8] : memref<1x1x256xf32, #tpu.memory_space<vmem>>, vector<1x1x256xf32>
      %13 = vector.shape_cast %12 : vector<1x1x256xf32> to vector<1x256xf32>
      %14 = vector.broadcast %13 : vector<1x256xf32> to vector<8x256xf32>
      %15 = arith.mulf %11, %14 : vector<8x256xf32>
      %16 = vector.shape_cast %15 : vector<8x256xf32> to vector<1x8x256xf32>
      %cst = arith.constant dense<0.000000e+00> : vector<1xf32>
      %17 = vector.multi_reduction <add>, %16, %cst [1, 2] : vector<1x8x256xf32> to vector<1xf32>
      %18 = vector.shape_cast %17 : vector<1xf32> to vector<1x1x1xf32>
      %19 = vector.extract %18[0, 0, 0] : f32 from vector<1x1x1xf32>
      %20 = vector.broadcast %19 : f32 to vector<1x1x1xf32>
      %c0_9 = arith.constant 0 : index
      %c0_10 = arith.constant 0 : index
      %c0_11 = arith.constant 0 : index
      %21 = vector.load %arg5[%c0_9, %c0_10, %c0_11] : memref<1x1x1xf32, #tpu.memory_space<vmem>>, vector<1x1x1xf32>
      tpu.vector_store %arg5[%c0_9, %c0_10, %c0_11], %20 {strides = array<i32>} : memref<1x1x1xf32, #tpu.memory_space<vmem>>, vector<1x1x1xf32>,
    } else {
    }
    return
  }
  func.func @transform_0(%arg0: i32, %arg1: i32) -> (i32, i32, i32) {
    %c0_i32 = arith.constant 0 : i32
    %c0_i32_0 = arith.constant 0 : i32
    %c0_i32_1 = arith.constant 0 : i32
    %c0_i32_2 = arith.constant 0 : i32
    return %c0_i32, %c0_i32_0, %c0_i32_1 : i32, i32, i32
  }
  func.func @transform_1(%arg0: i32, %arg1: i32) -> (i32, i32, i32) {
    %c1_i32 = arith.constant 1 : i32
    %0 = arith.muli %arg0, %c1_i32 : i32
    %1 = arith.addi %0, %arg1 : i32
    %c0_i32 = arith.constant 0 : i32
    %2 = arith.minsi %1, %c0_i32 : i32
    %c0_i32_0 = arith.constant 0 : i32
    %c0_i32_1 = arith.constant 0 : i32
    %c0_i32_2 = arith.constant 0 : i32
    return %2, %c0_i32_0, %c0_i32_1 : i32, i32, i32
  }
  func.func @transform_2(%arg0: i32, %arg1: i32) -> (i32, i32, i32) {
    %c1_i32 = arith.constant 1 : i32
    %0 = arith.muli %arg0, %c1_i32 : i32
    %1 = arith.addi %0, %arg1 : i32
    %c0_i32 = arith.constant 0 : i32
    %2 = arith.minsi %1, %c0_i32 : i32
    %c0_i32_0 = arith.constant 0 : i32
    %c0_i32_1 = arith.constant 0 : i32
    %c0_i32_2 = arith.constant 0 : i32
    return %2, %c0_i32_0, %c0_i32_1 : i32, i32, i32
  }
  func.func @transform_3(%arg0: i32, %arg1: i32) -> (i32, i32, i32) {
    %c0_i32 = arith.constant 0 : i32
    %c0_i32_0 = arith.constant 0 : i32
    %c0_i32_1 = arith.constant 0 : i32
    return %arg0, %c0_i32, %c0_i32_0 : i32, i32, i32
  }
}

</mosaic_0001>

<llo_original>
// kernel: tpu_custom_call.1
$region0: #{tpu_custom_call.1}
  #allocation0 [shape = 'u32[]', space=smem, size = 0x4, offset = 0x4, fixed_abs, tag = 'smem constant byte address 0x4 - core index']
  #allocation1 [shape = 'u32[72,128]{1,0:T(1,128)}', space=vmem, size = 0x9000, scoped, tag = 'internal scratch']
  #allocation2 [shape = 'f32[8,256]{1,0:T(8,128)}', space=vmem, size = 0x2000, scoped, tag = 'scratch operand']
  %s0 = inlined_call_operand.hbm [shape: f32[1,1,256], index: 0, kind: input, shape index: {}]
  %s1 = inlined_call_operand.hbm [shape: f32[1,8,256], index: 1, kind: input, shape index: {}]
  %s2 = inlined_call_operand.hbm [shape: f32[1,8,256], index: 2, kind: input, shape index: {}]
  %s3 = inlined_call_operand.vmem [shape: f32[2,1,1], index: 3, kind: output, shape index: {}]
  %s4 = sld [smem:[#allocation0]]
  $region69: #{tpu_custom_call.1} parent=0
    _
  %s6 = ssub.s32 1, %s4
  %s7 = scalar_select 0, %s6, %s4
  $region1: #{tpu_custom_call.1} parent=0
    #allocation3 [shape = 'u8[1024]{0}', space=vmem, size = 0x400, scoped, tag = 'input window, operand 0, single buffered']
    #allocation4 [shape = 's32[2]{0}', space=sflag, size = 0x8, scoped, tag = 'scoped memory for tpu_custom_call.1']
    #allocation5 [shape = 'u8[16384]{0}', space=vmem, size = 0x4000, scoped, tag = 'input window, operand 1']
    #allocation6 [shape = 's32[2]{0}', space=sflag, size = 0x8, scoped, tag = 'scoped memory for tpu_custom_call.1']
    #allocation7 [shape = 'u8[16384]{0}', space=vmem, size = 0x4000, scoped, tag = 'input window, operand 2']
    %8 = vsyncpa [#allocation4], 0
    %9 = vsyncpa [#allocation6], 0
    %s10 = scalar_lea.sflag [#allocation6], 1
    %11 = vsyncpa %s10, 0
    loop: start=0, step=1, limit=4
    $region2: #{tpu_custom_call.1} parent=1 // loop_pre_header
      _
    $region3: #{tpu_custom_call.1} parent=1 // loop_header
      %s13 = sphi 0, %s17
      %p14 = scmp.ge.s32.totalorder %s13, 4
      %s20 = sphi 0, %s32
      %s21 = sphi 0, %s28
      %s22 = sphi 0, %s20
      %s23 = sphi 0, %s21
      %s24 = sphi 0, %s22
      %s25 = sphi 0, %s23
      %s33 = sphi 0, %s33
      %s35 = sphi 0, %s33
      %s36 = sphi 0, %s35
      %s50 = sphi 0, %s36
      %s62 = sphi 0, %s64
      %s65 = sphi 0, %s62
      %s66 = sphi 0, %s65
      %s82 = sphi 0, %s66
      %s94 = sphi 0, %s96
      %s97 = sphi 0, %s94
      %s98 = sphi 0, %s97
      %s114 = sphi 0, %s98
      %s120 = sphi 0, %s122
      %s123 = sphi 0, %s120
      %s124 = sphi 0, %s123
      %s140 = sphi 0, %s124
    $region4: #{tpu_custom_call.1} parent=1 // loop_header_branch
      %16 = sbr.rel (%p14) target = $region8
    $region5: #{tpu_custom_call.1} parent=1 // loop_body
      %s18 = ssub.s32 %s13, 1
      %s19 = ssub.s32 %s13, 2
      %s26 = sadd.s32 1, %s21
      %p27 = scmp.ge.s32.totalorder %s26, 1
      %s28 = scalar_select %p27, 0, %s26
      %s29 = sadd.s32 1, %s20
      %s30 = scalar_select %p27, %s29, %s20
      %p31 = scmp.ge.s32.totalorder %s30, 2
      %s32 = scalar_select %p31, 0, %s30
      %s34 = sadd.s32 %s33, 1
      %p37 = scmp.eq.s32.totalorder %s13, 1
      %p38 = scmp.ne.s32.totalorder %s33, %s35
      %p39 = scmp.eq.s32.totalorder %s13, 0
      %p40 = por %p38, %p39
      %p41 = scmp.ne.s32.totalorder %s33, %s35
      %p42 = scmp.eq.s32.totalorder %s18, 1
      %p43 = por %p41, %p42
      %p44 = scmp.ne.s32.totalorder %s35, %s36
      %p45 = scmp.eq.s32.totalorder %s18, 0
      %p46 = por %p44, %p45
      %p47 = scmp.ne.s32.totalorder %s35, %s36
      %p48 = scmp.eq.s32.totalorder %s19, 1
      %p49 = por %p47, %p48
      %p51 = scmp.ne.s32.totalorder %s36, %s50
      %p52 = scmp.eq.s32.totalorder %s19, 0
      %p53 = por %p51, %p52
      %s54 = sadd.s32 %s20, %s21
      %p55 = scmp.lt.s32.totalorder %s54, 0
      %s56 = scalar_select %p55, %s54, 0
      %s57 = sadd.s32 %s32, %s28
      %p58 = scmp.lt.s32.totalorder %s57, 0
      %s59 = scalar_select %p58, %s57, 0
      %s60 = ssub.s32 %s56, %s59
      %p61 = scmp.eq.s32.totalorder %s60, 0
      %s63 = sadd.s32 %s62, 1
      %s64 = scalar_select %p61, %s62, %s63
      %p67 = pneg %p61
      %p68 = scmp.eq.s32.totalorder %s13, 1
      %p69 = por %p67, %p68
      %p70 = scmp.ne.s32.totalorder %s62, %s65
      %p71 = scmp.eq.s32.totalorder %s13, 0
      %p72 = por %p70, %p71
      %p73 = scmp.ne.s32.totalorder %s62, %s65
      %p74 = scmp.eq.s32.totalorder %s18, 1
      %p75 = por %p73, %p74
      %p76 = scmp.ne.s32.totalorder %s65, %s66
      %p77 = scmp.eq.s32.totalorder %s18, 0
      %p78 = por %p76, %p77
      %p79 = scmp.ne.s32.totalorder %s65, %s66
      %p80 = scmp.eq.s32.totalorder %s19, 1
      %p81 = por %p79, %p80
      %p83 = scmp.ne.s32.totalorder %s66, %s82
      %p84 = scmp.eq.s32.totalorder %s19, 0
      %p85 = por %p83, %p84
      %s86 = sadd.s32 %s20, %s21
      %p87 = scmp.lt.s32.totalorder %s86, 0
      %s88 = scalar_select %p87, %s86, 0
      %s89 = sadd.s32 %s32, %s28
      %p90 = scmp.lt.s32.totalorder %s89, 0
      %s91 = scalar_select %p90, %s89, 0
      %s92 = ssub.s32 %s88, %s91
      %p93 = scmp.eq.s32.totalorder %s92, 0
      %s95 = sadd.s32 %s94, 1
      %s96 = scalar_select %p93, %s94, %s95
      %p99 = pneg %p93
      %p100 = scmp.eq.s32.totalorder %s13, 1
      %p101 = por %p99, %p100
      %p102 = scmp.ne.s32.totalorder %s94, %s97
      %p103 = scmp.eq.s32.totalorder %s13, 0
      %p104 = por %p102, %p103
      %p105 = scmp.ne.s32.totalorder %s94, %s97
      %p106 = scmp.eq.s32.totalorder %s18, 1
      %p107 = por %p105, %p106
      %p108 = scmp.ne.s32.totalorder %s97, %s98
      %p109 = scmp.eq.s32.totalorder %s18, 0
      %p110 = por %p108, %p109
      %p111 = scmp.ne.s32.totalorder %s97, %s98
      %p112 = scmp.eq.s32.totalorder %s19, 1
      %p113 = por %p111, %p112
      %p115 = scmp.ne.s32.totalorder %s98, %s114
      %p116 = scmp.eq.s32.totalorder %s19, 0
      %p117 = por %p115, %p116
      %s118 = ssub.s32 %s20, %s32
      %p119 = scmp.eq.s32.totalorder %s118, 0
      %s121 = sadd.s32 %s120, 1
      %s122 = scalar_select %p119, %s120, %s121
      %p125 = pneg %p119
      %p126 = scmp.eq.s32.totalorder %s13, 1
      %p127 = por %p125, %p126
      %p128 = scmp.ne.s32.totalorder %s120, %s123
      %p129 = scmp.eq.s32.totalorder %s13, 0
      %p130 = por %p128, %p129
      %p131 = scmp.ne.s32.totalorder %s120, %s123
      %p132 = scmp.eq.s32.totalorder %s18, 1
      %p133 = por %p131, %p132
      %p134 = scmp.ne.s32.totalorder %s123, %s124
      %p135 = scmp.eq.s32.totalorder %s18, 0
      %p136 = por %p134, %p135
      %p137 = scmp.ne.s32.totalorder %s123, %s124
      %p138 = scmp.eq.s32.totalorder %s19, 1
      %p139 = por %p137, %p138
      %p141 = scmp.ne.s32.totalorder %s124, %s140
      %p142 = scmp.eq.s32.totalorder %s19, 0
      %p143 = por %p141, %p142
      %p144 = scmp.le.s32.totalorder 1, %s13
      %p145 = scmp.lt.s32.totalorder %s13, 3
      %p146 = pnand %p144, %p145
      %p147 = pneg %p146
      // Predicated region
      $region9: #{tpu_custom_call.1} parent=5 // pred_check
        _
      $region10: #{tpu_custom_call.1} parent=5 // pred_check_branch
        %149 = sbr.rel (%p146) target = $region12
      $region11: #{tpu_custom_call.1} parent=5 // pred_region
        %s150 = ssub.s32 %s13, 1
        // Predicated region
        $region13: #{tpu_custom_call.1} parent=11 // pred_check
          %p151 = pneg %p46
        $region14: #{tpu_custom_call.1} parent=11 // pred_check_branch
          %153 = sbr.rel (%p151) target = $region16
        $region15: #{tpu_custom_call.1} parent=11 // pred_region
          %155 = vsyncadd [#allocation4], 0
          %s157 = sshll.u32 %s0, 4
          %s158 = int_to_ptr.hbm [resolvable:$true] %s157
          %s159 = sshll.u32 [#allocation3], 4
          %s160 = int_to_ptr.vmem [resolvable:$true] %s159
          %162 = dma.hbm_to_vmem [thread:$0]  %s158, 32, %s160, [#allocation4]
        $region16: #{tpu_custom_call.1} parent=11 // pred_fallthru
          _
      $region12: #{tpu_custom_call.1} parent=5 // pred_fallthru
        _
      %p163 = scmp.lt.s32.totalorder %s13, 2
      // Predicated region
      $region17: #{tpu_custom_call.1} parent=5 // pred_check
        %p164 = pneg %p163
      $region18: #{tpu_custom_call.1} parent=5 // pred_check_branch
        %166 = sbr.rel (%p164) target = $region20
      $region19: #{tpu_custom_call.1} parent=5 // pred_region
        // Predicated region
        $region21: #{tpu_custom_call.1} parent=19 // pred_check
          %p167 = pneg %p72
        $region22: #{tpu_custom_call.1} parent=19 // pred_check_branch
          %169 = sbr.rel (%p167) target = $region24
        $region23: #{tpu_custom_call.1} parent=19 // pred_region
          %s170 = sand.u32 %s13, 1
          %s171 = scalar_lea.sflag [#allocation6], %s170
          %s172 = sand.u32 %s62, 1
          %s173 = smul.addr %s172, 16
          %s174 = scalar_lea.vmem [#allocation5], %s173
          %s175 = sadd.s32 %s20, %s21
          %p176 = scmp.lt.s32.totalorder %s175, 0
          %s177 = scalar_select %p176, %s175, 0
          %179 = vsyncadd %s171, 0
          %s180 = smul.addr %s177, 2
          %s181 = smul.addr %s180, 8
          %s182 = scalar_lea.hbm %s1, %s181
          %s184 = sshll.u32 %s182, 4
          %s185 = int_to_ptr.hbm [resolvable:$true] %s184
          %s186 = sshll.u32 %s174, 4
          %s187 = int_to_ptr.vmem [resolvable:$true] %s186
          %189 = dma.hbm_to_vmem [thread:$0]  %s185, 256, %s187, %s171
        $region24: #{tpu_custom_call.1} parent=19 // pred_fallthru
          _
        // Predicated region
        $region25: #{tpu_custom_call.1} parent=19 // pred_check
          %p190 = pneg %p104
        $region26: #{tpu_custom_call.1} parent=19 // pred_check_branch
          %192 = sbr.rel (%p190) target = $region28
        $region27: #{tpu_custom_call.1} parent=19 // pred_region
          %s193 = sand.u32 %s13, 1
          %s194 = scalar_lea.sflag [#allocation6], %s193
          %s195 = sand.u32 %s94, 1
          %s196 = smul.addr %s195, 16
          %s197 = scalar_lea.vmem [#allocation7], %s196
          %s198 = sadd.s32 %s20, %s21
          %p199 = scmp.lt.s32.totalorder %s198, 0
          %s200 = scalar_select %p199, %s198, 0
          %202 = vsyncadd %s194, 0
          %s203 = smul.addr %s200, 2
          %s204 = smul.addr %s203, 8
          %s205 = scalar_lea.hbm %s2, %s204
          %s207 = sshll.u32 %s205, 4
          %s208 = int_to_ptr.hbm [resolvable:$true] %s207
          %s209 = sshll.u32 %s197, 4
          %s210 = int_to_ptr.vmem [resolvable:$true] %s209
          %212 = dma.hbm_to_vmem [thread:$0]  %s208, 256, %s210, %s194
        $region28: #{tpu_custom_call.1} parent=19 // pred_fallthru
          _
      $region20: #{tpu_custom_call.1} parent=5 // pred_fallthru
        _
      %p213 = scmp.le.s32.totalorder 1, %s13
      %p214 = scmp.lt.s32.totalorder %s13, 3
      %p215 = pnand %p213, %p214
      %p216 = pneg %p215
      // Predicated region
      $region29: #{tpu_custom_call.1} parent=5 // pred_check
        _
      $region30: #{tpu_custom_call.1} parent=5 // pred_check_branch
        %218 = sbr.rel (%p215) target = $region32
      $region31: #{tpu_custom_call.1} parent=5 // pred_region
        %s219 = ssub.s32 %s13, 1
        // Predicated region
        $region33: #{tpu_custom_call.1} parent=31 // pred_check
          %p220 = pneg %p46
        $region34: #{tpu_custom_call.1} parent=31 // pred_check_branch
          %222 = sbr.rel (%p220) target = $region36
        $region35: #{tpu_custom_call.1} parent=31 // pred_region
          %224 = dma.done [#allocation4], 32
        $region36: #{tpu_custom_call.1} parent=31 // pred_fallthru
          _
        %s225 = sand.u32 %s18, 1
        %s226 = scalar_lea.sflag [#allocation6], %s225
        %s227 = sand.u32 %s65, 1
        %s228 = smul.addr %s227, 16
        %s229 = scalar_lea.vmem [#allocation5], %s228
        // Predicated region
        $region37: #{tpu_custom_call.1} parent=31 // pred_check
          %p230 = pneg %p78
        $region38: #{tpu_custom_call.1} parent=31 // pred_check_branch
          %232 = sbr.rel (%p230) target = $region40
        $region39: #{tpu_custom_call.1} parent=31 // pred_region
          %234 = dma.done %s226, 256
        $region40: #{tpu_custom_call.1} parent=31 // pred_fallthru
          _
        %s235 = sand.u32 %s18, 1
        %s236 = scalar_lea.sflag [#allocation6], %s235
        %s237 = sand.u32 %s97, 1
        %s238 = smul.addr %s237, 16
        %s239 = scalar_lea.vmem [#allocation7], %s238
        // Predicated region
        $region41: #{tpu_custom_call.1} parent=31 // pred_check
          %p240 = pneg %p110
        $region42: #{tpu_custom_call.1} parent=31 // pred_check_branch
          %242 = sbr.rel (%p240) target = $region44
        $region43: #{tpu_custom_call.1} parent=31 // pred_region
          %244 = dma.done %s236, 256
        $region44: #{tpu_custom_call.1} parent=31 // pred_fallthru
          _
        %p245 = pneg %p46
        %p246 = pneg %p43
        %s247 = sand.u32 %s18, 1
        %s248 = scalar_lea.sflag [#allocation6], %s247
        %s249 = sand.u32 %s65, 1
        %s250 = smul.addr %s249, 16
        %s251 = scalar_lea.vmem [#allocation5], %s250
        %p252 = pneg %p78
        %p253 = pneg %p75
        %s254 = sand.u32 %s18, 1
        %s255 = scalar_lea.sflag [#allocation6], %s254
        %s256 = sand.u32 %s97, 1
        %s257 = smul.addr %s256, 16
        %s258 = scalar_lea.vmem [#allocation7], %s257
        %p259 = pneg %p110
        %p260 = pneg %p107
        %p261 = pneg %p136
        %p262 = pneg %p133
        %p263 = scmp.lt.s32.totalorder %s22, 1
        %s264 = scalar_select %p263, %s22, 1
        %s265 = scalar_lea.vmem %s3, %s264
        %s266 = sadd.s32 %s22, %s23
        %p267 = scmp.lt.s32.totalorder %s266, 0
        %s268 = scalar_select %p267, %s266, 0
        %s269 = sadd.s32 %s22, %s23
        %p270 = scmp.lt.s32.totalorder %s269, 0
        %s271 = scalar_select %p270, %s269, 0
        %p272 = scmp.lt.s32.totalorder %s22, 1
        %s273 = scalar_select %p272, %s22, 1
        %s274 = scalar_lea.vmem %s3, %s273
        %p275 = scmp.eq.s32.totalorder %s23, 0
        // Predicated region
        $region45: #{tpu_custom_call.1} parent=31 // pred_check
          %p276 = pneg %p275
        $region46: #{tpu_custom_call.1} parent=31 // pred_check_branch
          %278 = sbr.rel (%p276) target = $region48
        $region47: #{tpu_custom_call.1} parent=31 // pred_region
          %279 = vst [vmem:[#allocation2] sm:$0xff] 0.0
          %280 = vst [vmem:[#allocation2 + $0x8] sm:$0xff] 0.0
        $region48: #{tpu_custom_call.1} parent=31 // pred_fallthru
          _
        %s281 = sadd.s32 %s22, %s23
        %p282 = scmp.lt.s32.totalorder %s281, 1
        // Predicated region
        $region49: #{tpu_custom_call.1} parent=31 // pred_check
          %p283 = pneg %p282
        $region50: #{tpu_custom_call.1} parent=31 // pred_check_branch
          %285 = sbr.rel (%p283) target = $region52
        $region51: #{tpu_custom_call.1} parent=31 // pred_region
          %v286 = vld [vmem:[%s229] sm:$0xff]
          %v287 = vld [vmem:[%s229 + $0x8] sm:$0xff]
          %v288 = vld [vmem:[%s239] sm:$0xff]
          %v289 = vld [vmem:[%s239 + $0x8] sm:$0xff]
          %v290 = vsub.f32 %v286, %v288
          %v291 = vsub.f32 %v287, %v289
          %v292 = vmul.f32 %v290, %v290
          %v293 = vmul.f32 %v291, %v291
          %v294 = vld [vmem:[#allocation2] sm:$0xff]
          %v295 = vld [vmem:[#allocation2 + $0x8] sm:$0xff]
          %v296 = vadd.f32 %v294, %v292
          %v297 = vadd.f32 %v295, %v293
          %298 = vst [vmem:[#allocation2] sm:$0xff] %v296
          %299 = vst [vmem:[#allocation2 + $0x8] sm:$0xff] %v297
        $region52: #{tpu_custom_call.1} parent=31 // pred_fallthru
          _
        // Predicated region
        $region53: #{tpu_custom_call.1} parent=31 // pred_check
          %p300 = pneg %p275
        $region54: #{tpu_custom_call.1} parent=31 // pred_check_branch
          %302 = sbr.rel (%p300) target = $region56
        $region55: #{tpu_custom_call.1} parent=31 // pred_region
          %v303 = vld [vmem:[#allocation2] sm:$0xff]
          %v304 = vld [vmem:[#allocation2 + $0x8] sm:$0xff]
          %v305 = vld [vmem:[#allocation3] sm:$0x3]
          %v307 = vperm.slane %v305, 0
          %v308 = vperm.slane %v305, 1
          %v311 = vmul.f32 %v303, %v307
          %v312 = vmul.f32 %v304, %v308
          %v313 = vadd.f32 %v311, %v312
          %314 = vadd.xlane.f32.xlu0 %v313
          %v315 = vpop.xlane.xlu0 %314
          %v316 = vrot.slane %v315, 4
          %v317 = vadd.f32 %v315, %v316
          %v318 = vrot.slane %v317, 2
          %v319 = vadd.f32 %v317, %v318
          %v320 = vrot.slane %v319, 1
          %v321 = vadd.f32 %v319, %v320
          %s322 = vtos %v321
          %v323 = vstv %s322
          %vm324 = vcmask 0
          %325 = vst.msk [vmem:[%s274] sm:$0x1] %vm324, %v323
        $region56: #{tpu_custom_call.1} parent=31 // pred_fallthru
          _
        %p326 = scmp.lt.s32.totalorder %s22, 1
        %s327 = scalar_select %p326, %s22, 1
        %s328 = scalar_lea.vmem %s3, %s327
        // Predicated region
        $region57: #{tpu_custom_call.1} parent=31 // pred_check
          %p329 = pneg %p133
        $region58: #{tpu_custom_call.1} parent=31 // pred_check_branch
          %331 = sbr.rel (%p329) target = $region60
        $region59: #{tpu_custom_call.1} parent=31 // pred_region
          _
        $region60: #{tpu_custom_call.1} parent=31 // pred_fallthru
          _
      $region32: #{tpu_custom_call.1} parent=5 // pred_fallthru
        _
      %p332 = scmp.le.s32.totalorder 2, %s13
      // Predicated region
      $region61: #{tpu_custom_call.1} parent=5 // pred_check
        %p333 = pneg %p332
      $region62: #{tpu_custom_call.1} parent=5 // pred_check_branch
        %335 = sbr.rel (%p333) target = $region64
      $region63: #{tpu_custom_call.1} parent=5 // pred_region
        %s336 = ssub.s32 %s13, 2
        // Predicated region
        $region65: #{tpu_custom_call.1} parent=63 // pred_check
          %p337 = pneg %p139
        $region66: #{tpu_custom_call.1} parent=63 // pred_check_branch
          %339 = sbr.rel (%p337) target = $region68
        $region67: #{tpu_custom_call.1} parent=63 // pred_region
          %p340 = scmp.lt.s32.totalorder %s24, 1
          %s341 = scalar_select %p340, %s24, 1
          %s342 = scalar_lea.vmem %s3, %s341
        $region68: #{tpu_custom_call.1} parent=63 // pred_fallthru
          _
      $region64: #{tpu_custom_call.1} parent=5 // pred_fallthru
        _
    $region6: #{tpu_custom_call.1} parent=1 // loop_footer
      %s17 = sadd.s32 1, %s13
    $region7: #{tpu_custom_call.1} parent=1 // loop_footer_branch
      %12 = sbr.rel target = $region3
    $region8: #{tpu_custom_call.1} parent=1 // loop_exit
      _
    %343 = vsyncpa [#allocation4], 1
    %s344 = scalar_lea.sflag [#allocation4], 1
    %345 = vsyncpa %s344, 1
    %346 = vsyncpa [#allocation6], 1
    %s347 = scalar_lea.sflag [#allocation6], 1
    %348 = vsyncpa %s347, 1

</llo_original>
